<compile_context>
chip_gen: v6e
topology: v6e:2x2x1
jax: 0.10.0
libtpu: 0.0.40
codegen_flags: <defaults>
</compile_context>

<pallas_src>
import jax
import jax.numpy as jnp
from jax.experimental import pallas as pl
from jax.experimental.pallas import tpu as pltpu

HIDDEN = 512
LANE = 128


def _lang_disc_kernel(x_ref, w1t_ref, b1_ref, w2_ref, b2_ref, o_ref):
    # x_ref: (K, TB) activations, batch on lanes.  w1t_ref: (H, K).  b1_ref: (H, 1).
    # w2_ref: (H, 1).  b2_ref: (1, 1) SMEM scalar.  o_ref: (1, TB) lane-dense row.
    x = x_ref[...]
    if x.dtype != w1t_ref.dtype:          # bf16 fast path: weights pre-cast in wrapper,
        x = x.astype(w1t_ref.dtype)       # only the per-tile activations cast here.

    # Fused first layer (concat folded into a single K = Fv+Fl contraction):
    # (H, K) @ (K, TB) -> (H, TB), f32 accumulate on the MXU.
    h = jnp.dot(w1t_ref[...], x, preferred_element_type=jnp.float32)
    h = jnp.maximum(h + b1_ref[...], 0.0)           # (H, 1) bias broadcast over lanes

    # Dropout: eval-mode identity.
    # TODO(synk): training-mode dropout via pltpu.prng_seed / pltpu.prng_random_bits.

    # Second layer (512 -> 1) on VPU/XLU: broadcast-mul with the (H, 1) weight column,
    # sublane-reduce over H -> exact-f32, lane-dense (1, TB) result.
    out = jnp.sum(h * w2_ref[...], axis=0, keepdims=True) + b2_ref[0, 0]
    o_ref[...] = out.astype(o_ref.dtype)


def _pick_batch_tile(batch, *, tb_max=2048):
    # Per-grid-step overhead dominates here, so prefer few, large tiles. Balance the
    # tile size against B to limit padding waste, keep TB a multiple of 128 lanes so
    # the (1, TB) output row stays dense, and force >= 2 tiles once B >= 256 so the
    # "parallel" batch axis can shard across both v7x TensorCores.
    n_tiles = pl.cdiv(batch, tb_max)
    if batch >= 2 * LANE:
        n_tiles = max(n_tiles, 2)
    tb = pl.cdiv(pl.cdiv(batch, n_tiles), LANE) * LANE
    return max(LANE, min(tb, tb_max))


def _vmem_limit_bytes(tb, kin, hid, w_bytes):
    # Derived from the actual working set (portable to v7x's 64 MiB physical VMEM).
    x_buf = 2 * kin * tb * 4                         # double-buffered (K, TB) f32 tile
    o_buf = 2 * tb * 4                               # double-buffered (1, TB) f32 row
    weights = 2 * (hid * kin * w_bytes + hid * 4 + hid * 4)   # w1t, b1, w2 (resident)
    hidden = 3 * hid * tb * 4                        # f32 hidden + elementwise temps
    return int(min(x_buf + o_buf + weights + hidden + (16 << 20), 60 << 20))


def lang_discriminator_forward(vis_emb, lang_emb, params, *,
                               use_bf16_matmul=True, batch_tile=None):
    """vis_emb: (B, in_features), lang_emb: (B, lang_dim) -> (B, 1) float32.

    If batch_tile is given it must be a multiple of 128.
    """
    B, Fv = vis_emb.shape
    Fl = lang_emb.shape[1]
    K = Fv + Fl
    H = params["w1t"].shape[0]

    TB = batch_tile if batch_tile is not None else _pick_batch_tile(B)
    num_tiles = pl.cdiv(B, TB)
    B_pad = num_tiles * TB

    # Fuse the concat into one K = Fv+Fl operand and put the batch on lanes:
    # (B, K) -> pad -> (K, B_pad).  Pure layout plumbing on a tiny activation array.
    x = jnp.concatenate([vis_emb, lang_emb], axis=-1)
    if B_pad != B:
        x = jnp.pad(x, ((0, B_pad - B), (0, 0)))
    x_t = x.T

    w1t = params["w1t"]
    if use_bf16_matmul:
        w1t = w1t.astype(jnp.bfloat16)      # one-time cast: no per-step VPU casts,
                                            # half the weight HBM->VMEM traffic.
    b1, w2, b2 = params["b1"], params["w2"], params["b2"]

    out_row = pl.pallas_call(
        _lang_disc_kernel,
        out_shape=jax.ShapeDtypeStruct((1, B_pad), jnp.float32),
        grid=(num_tiles,),
        in_specs=[
            pl.BlockSpec((K, TB), lambda i: (0, i)),   # activation tile (batch on lanes)
            pl.BlockSpec((H, K), lambda i: (0, 0)),    # w1t  (VMEM-resident)
            pl.BlockSpec((H, 1), lambda i: (0, 0)),    # b1   (VMEM-resident)
            pl.BlockSpec((H, 1), lambda i: (0, 0)),    # w2   (VMEM-resident)
            pl.BlockSpec(memory_space=pltpu.MemorySpace.SMEM),   # b2 scalar
        ],
        out_specs=pl.BlockSpec((1, TB), lambda i: (0, i)),       # lane-dense output row
        compiler_params=pltpu.CompilerParams(
            dimension_semantics=("parallel",),
            vmem_limit_bytes=_vmem_limit_bytes(TB, K, H, w1t.dtype.itemsize),
        ),
    )(x_t, w1t, b1, w2, b2)

    return out_row[0, :B].reshape(B, 1)


def init_params(key, in_features, lang_dim, hidden=HIDDEN):
    """nn.Linear-equivalent init; stored pre-transposed for the batch-on-lanes kernel."""
    k1, k2, k3, k4 = jax.random.split(key, 4)
    fan_in1 = in_features + lang_dim
    lim1 = 1.0 / jnp.sqrt(fan_in1)
    lim2 = 1.0 / jnp.sqrt(hidden)
    w1 = jax.random.uniform(k1, (fan_in1, hidden), jnp.float32, -lim1, lim1)
    b1 = jax.random.uniform(k2, (hidden,), jnp.float32, -lim1, lim1)
    w2 = jax.random.uniform(k3, (hidden, 1), jnp.float32, -lim2, lim2)
    b2 = jax.random.uniform(k4, (1, 1), jnp.float32, -lim2, lim2)
    return {
        "w1t": w1.T,                  # (512, Fv+Fl) fused first-layer weight
        "b1": b1.reshape(hidden, 1),  # (512, 1) column, broadcasts over batch lanes
        "w2": w2,                     # (512, 1) column for the VPU/XLU head
        "b2": b2,                     # (1, 1) SMEM scalar
    }


def _reference(vis_emb, lang_emb, params):
    x = jnp.concatenate([vis_emb, lang_emb], axis=-1)
    h = jnp.maximum(x @ params["w1t"].T + params["b1"].T, 0.0)
    return h @ params["w2"] + params["b2"]


if __name__ == "__main__":
    # Small shapes consistent with the module's forward.
    B = 8             # batch
    IN_FEATURES = 32  # vis_emb feature dim
    LANG_DIM = 16     # lang_emb feature dim

    key = jax.random.PRNGKey(0)
    k_vis, k_lang, k_params = jax.random.split(key, 3)

    vis_emb = jax.random.normal(k_vis, (B, IN_FEATURES), jnp.float32)
    lang_emb = jax.random.normal(k_lang, (B, LANG_DIM), jnp.float32)
    params = init_params(k_params, IN_FEATURES, LANG_DIM)

    ref = _reference(vis_emb, lang_emb, params)

    # 1) Exact-parity check: f32 operands.
    out_f32 = jax.block_until_ready(
        lang_discriminator_forward(vis_emb, lang_emb, params, use_bf16_matmul=False))
    assert out_f32.shape == (B, 1), out_f32.shape
    assert jnp.allclose(out_f32, ref, atol=1e-4, rtol=1e-4), "f32 kernel mismatch vs reference"

    # 2) Fast path: bf16 weights/activations, f32 accumulation (looser tolerance by design).
    out_bf16 = jax.block_until_ready(
        lang_discriminator_forward(vis_emb, lang_emb, params, use_bf16_matmul=True))
    assert out_bf16.shape == (B, 1), out_bf16.shape
    assert jnp.allclose(out_bf16, ref, atol=2e-2, rtol=2e-2), "bf16 kernel mismatch vs reference"

    # 3) Ragged batch exercises padding + the multi-tile (megacore-friendly) grid path.
    B2 = 300
    vis2 = jax.random.normal(jax.random.PRNGKey(1), (B2, IN_FEATURES), jnp.float32)
    lang2 = jax.random.normal(jax.random.PRNGKey(2), (B2, LANG_DIM), jnp.float32)
    out2 = jax.block_until_ready(
        lang_discriminator_forward(vis2, lang2, params, use_bf16_matmul=False))
    ref2 = _reference(vis2, lang2, params)
    assert out2.shape == (B2, 1), out2.shape
    assert jnp.allclose(out2, ref2, atol=1e-4, rtol=1e-4), "ragged-batch kernel mismatch"

    print("KERNEL_OK")
</pallas_src>

<mosaic_0001>
module attributes {stable_mosaic.version = 11 : i64} {
  func.func @_lang_disc_kernel(%arg0: i32, %arg1: memref<48x128xf32, #tpu.memory_space<vmem>>, %arg2: memref<512x48xf32, #tpu.memory_space<vmem>>, %arg3: memref<512x1xf32, #tpu.memory_space<vmem>>, %arg4: memref<512x1xf32, #tpu.memory_space<vmem>>, %arg5: memref<1x1xf32, #tpu.memory_space<smem>>, %arg6: memref<1x128xf32, #tpu.memory_space<vmem>>) attributes {dimension_semantics = [#tpu.dimension_semantics<parallel>], iteration_bounds = array<i64: 1>, scalar_prefetch = 0 : i64, scratch_operands = 0 : i64, tpu.core_type = #tpu.core_type<tc>, window_params = [{transform_indices = @transform_0, window_bounds = array<i64: 48, 128>}, {pipeline_mode = #tpu.pipeline_mode<synchronous>, transform_indices = @transform_1, window_bounds = array<i64: 512, 48>}, {pipeline_mode = #tpu.pipeline_mode<synchronous>, transform_indices = @transform_2, window_bounds = array<i64: 512, 1>}, {pipeline_mode = #tpu.pipeline_mode<synchronous>, transform_indices = @transform_3, window_bounds = array<i64: 512, 1>}, {transform_indices = @transform_4, window_bounds = array<i64: 1, 1>}, {transform_indices = @transform_5, window_bounds = array<i64: 1, 128>}]} {
    %c0 = arith.constant 0 : index
    %c0_0 = arith.constant 0 : index
    %0 = vector.load %arg1[%c0, %c0_0] : memref<48x128xf32, #tpu.memory_space<vmem>>, vector<48x128xf32>
    %c0_1 = arith.constant 0 : index
    %c0_2 = arith.constant 0 : index
    %1 = vector.load %arg2[%c0_1, %c0_2] : memref<512x48xf32, #tpu.memory_space<vmem>>, vector<512x48xf32>
    %cst = arith.constant dense<0.000000e+00> : vector<512x128xf32>
    %2 = tpu.matmul %1, %0, %cst {dimension_numbers = #tpu.dot_dimension_numbers<[1], [0], [0], [1], [0, 0, 1, 1], [], []>} : vector<512x48xf32>, vector<48x128xf32>, vector<512x128xf32> -> vector<512x128xf32>
    %c0_3 = arith.constant 0 : index
    %c0_4 = arith.constant 0 : index
    %3 = vector.load %arg3[%c0_3, %c0_4] : memref<512x1xf32, #tpu.memory_space<vmem>>, vector<512x1xf32>
    %4 = vector.broadcast %3 : vector<512x1xf32> to vector<512x128xf32>
    %5 = arith.addf %2, %4 : vector<512x128xf32>
    %cst_5 = arith.constant 0.000000e+00 : f32
    %6 = vector.broadcast %cst_5 : f32 to vector<512x128xf32>
    %7 = arith.maximumf %5, %6 : vector<512x128xf32>
    %c0_6 = arith.constant 0 : index
    %c0_7 = arith.constant 0 : index
    %8 = vector.load %arg4[%c0_6, %c0_7] : memref<512x1xf32, #tpu.memory_space<vmem>>, vector<512x1xf32>
    %9 = vector.broadcast %8 : vector<512x1xf32> to vector<512x128xf32>
    %10 = arith.mulf %7, %9 : vector<512x128xf32>
    %cst_8 = arith.constant dense<0.000000e+00> : vector<128xf32>
    %11 = vector.multi_reduction <add>, %10, %cst_8 [0] : vector<512x128xf32> to vector<128xf32>
    %12 = vector.shape_cast %11 : vector<128xf32> to vector<1x128xf32>
    %c0_9 = arith.constant 0 : index
    %c0_10 = arith.constant 0 : index
    %13 = memref.load %arg5[%c0_9, %c0_10] : memref<1x1xf32, #tpu.memory_space<smem>>
    %14 = vector.broadcast %13 : f32 to vector<1x128xf32>
    %15 = arith.addf %12, %14 : vector<1x128xf32>
    %c0_11 = arith.constant 0 : index
    %c0_12 = arith.constant 0 : index
    %16 = vector.load %arg6[%c0_11, %c0_12] : memref<1x128xf32, #tpu.memory_space<vmem>>, vector<1x128xf32>
    tpu.vector_store %arg6[%c0_11, %c0_12], %15 {strides = array<i32>} : memref<1x128xf32, #tpu.memory_space<vmem>>, vector<1x128xf32>,
    return
  }
  func.func @transform_0(%arg0: i32) -> (i32, i32) {
    %c0_i32 = arith.constant 0 : i32
    %c0_i32_0 = arith.constant 0 : i32
    return %c0_i32, %arg0 : i32, i32
  }
  func.func @transform_1(%arg0: i32) -> (i32, i32) {
    %c0_i32 = arith.constant 0 : i32
    %c0_i32_0 = arith.constant 0 : i32
    %c0_i32_1 = arith.constant 0 : i32
    return %c0_i32, %c0_i32_0 : i32, i32
  }
  func.func @transform_2(%arg0: i32) -> (i32, i32) {
    %c0_i32 = arith.constant 0 : i32
    %c0_i32_0 = arith.constant 0 : i32
    %c0_i32_1 = arith.constant 0 : i32
    return %c0_i32, %c0_i32_0 : i32, i32
  }
  func.func @transform_3(%arg0: i32) -> (i32, i32) {
    %c0_i32 = arith.constant 0 : i32
    %c0_i32_0 = arith.constant 0 : i32
    %c0_i32_1 = arith.constant 0 : i32
    return %c0_i32, %c0_i32_0 : i32, i32
  }
  func.func @transform_4(%arg0: i32) -> (i32, i32) {
    %c0_i32 = arith.constant 0 : i32
    %c0_i32_0 = arith.constant 0 : i32
    %c0_i32_1 = arith.constant 0 : i32
    return %c0_i32, %c0_i32_0 : i32, i32
  }
  func.func @transform_5(%arg0: i32) -> (i32, i32) {
    %c0_i32 = arith.constant 0 : i32
    %c0_i32_0 = arith.constant 0 : i32
    return %c0_i32, %arg0 : i32, i32
  }
}

</mosaic_0001>

<llo_original>
// kernel: tpu_custom_call.1
$region0: #{tpu_custom_call.1}
  #allocation0 [shape = 'u32[]', space=smem, size = 0x4, offset = 0x4, fixed_abs, tag = 'smem constant byte address 0x4 - core index']
  #allocation1 [shape = 'u32[144,128]{1,0:T(1,128)}', space=vmem, size = 0x12000, scoped, tag = 'internal scratch']
  #allocation2 [shape = 'f32[1,1]{1,0:T(1,128)S(6)}', space=smem, size = 0x200, scoped, tag = 'scoped memory for tpu_custom_call.1']
  %s0 = inlined_call_operand.vmem [shape: f32[48,128], index: 0, kind: input, shape index: {}]
  %s1 = inlined_call_operand.vmem [shape: f32[512,48], index: 1, kind: input, shape index: {}]
  %s2 = inlined_call_operand.vmem [shape: f32[512,1], index: 2, kind: input, shape index: {}]
  %s3 = inlined_call_operand.vmem [shape: f32[512,1], index: 3, kind: input, shape index: {}]
  %s4 = inlined_call_operand.<no memory space> [shape: f32[1,1], index: 4, kind: input, shape index: {}]
  %s5 = inlined_call_operand.hbm [shape: f32[1,128], index: 5, kind: output, shape index: {}]
  %s6 = sld [smem:[#allocation0]]
  $region30: #{tpu_custom_call.1} parent=0
    _
  %s8 = ssub.s32 1, %s6
  %s9 = scalar_select 0, %s8, %s6
  %10 = sst [smem:[#allocation2]] %s4
  $region1: #{tpu_custom_call.1} parent=0
    #allocation3 [shape = 'u8[512]{0}', space=vmem, size = 0x400, scoped, tag = 'output window, operand 0, single buffered']
    #allocation4 [shape = 's32[1]{0}', space=sflag, size = 0x4, scoped, tag = 'scoped memory for tpu_custom_call.1']
    %11 = vsyncpa [#allocation4], 0
    // Predicated region
    $region2: #{tpu_custom_call.1} parent=1 // pred_check
      _
    $region3: #{tpu_custom_call.1} parent=1 // pred_check_branch
      %13 = sbr.rel (0) target = $region5
    $region4: #{tpu_custom_call.1} parent=1 // pred_region
      _
    $region5: #{tpu_custom_call.1} parent=1 // pred_fallthru
      _
    // Predicated region
    $region6: #{tpu_custom_call.1} parent=1 // pred_check
      _
    $region7: #{tpu_custom_call.1} parent=1 // pred_check_branch
      %15 = sbr.rel (0) target = $region9
    $region8: #{tpu_custom_call.1} parent=1 // pred_region
      _
    $region9: #{tpu_custom_call.1} parent=1 // pred_fallthru
      _
    // Predicated region
    $region10: #{tpu_custom_call.1} parent=1 // pred_check
      _
    $region11: #{tpu_custom_call.1} parent=1 // pred_check_branch
      %17 = sbr.rel (0) target = $region13
    $region12: #{tpu_custom_call.1} parent=1 // pred_region
      _
    $region13: #{tpu_custom_call.1} parent=1 // pred_fallthru
      _
    // Predicated region
    $region14: #{tpu_custom_call.1} parent=1 // pred_check
      _
    $region15: #{tpu_custom_call.1} parent=1 // pred_check_branch
      %19 = sbr.rel (0) target = $region17
    $region16: #{tpu_custom_call.1} parent=1 // pred_region
      _
    $region17: #{tpu_custom_call.1} parent=1 // pred_fallthru
      _
    // Predicated region
    $region18: #{tpu_custom_call.1} parent=1 // pred_check
      _
    $region19: #{tpu_custom_call.1} parent=1 // pred_check_branch
      %21 = sbr.rel (0) target = $region21
    $region20: #{tpu_custom_call.1} parent=1 // pred_region
      _
    $region21: #{tpu_custom_call.1} parent=1 // pred_fallthru
      _
    %v22 = vld [vmem:[%s0] sm:$0xff]
    %v23 = vld [vmem:[%s0 + $0x8] sm:$0xff]
    %v24 = vld [vmem:[%s0 + $0x10] sm:$0xff]
    %v25 = vld [vmem:[%s0 + $0x18] sm:$0xff]
    %v26 = vld [vmem:[%s0 + $0x20] sm:$0xff]
    %v27 = vld [vmem:[%s0 + $0x28] sm:$0xff]
    %v28 = vld [vmem:[%s1] sm:$0xff]
    %v29 = vld [vmem:[%s1 + $0x8] sm:$0xff]
    %v30 = vld [vmem:[%s1 + $0x10] sm:$0xff]
    %v31 = vld [vmem:[%s1 + $0x18] sm:$0xff]
    %v32 = vld [vmem:[%s1 + $0x20] sm:$0xff]
    %v33 = vld [vmem:[%s1 + $0x28] sm:$0xff]
    %v34 = vld [vmem:[%s1 + $0x30] sm:$0xff]
    %v35 = vld [vmem:[%s1 + $0x38] sm:$0xff]
    %v36 = vld [vmem:[%s1 + $0x40] sm:$0xff]
    %v37 = vld [vmem:[%s1 + $0x48] sm:$0xff]
    %v38 = vld [vmem:[%s1 + $0x50] sm:$0xff]
    %v39 = vld [vmem:[%s1 + $0x58] sm:$0xff]
    %v40 = vld [vmem:[%s1 + $0x60] sm:$0xff]
    %v41 = vld [vmem:[%s1 + $0x68] sm:$0xff]
    %v42 = vld [vmem:[%s1 + $0x70] sm:$0xff]
    %v43 = vld [vmem:[%s1 + $0x78] sm:$0xff]
    %v44 = vld [vmem:[%s1 + $0x80] sm:$0xff]
    %v45 = vld [vmem:[%s1 + $0x88] sm:$0xff]
    %v46 = vld [vmem:[%s1 + $0x90] sm:$0xff]
    %v47 = vld [vmem:[%s1 + $0x98] sm:$0xff]
    %v48 = vld [vmem:[%s1 + $0xa0] sm:$0xff]
    %v49 = vld [vmem:[%s1 + $0xa8] sm:$0xff]
    %v50 = vld [vmem:[%s1 + $0xb0] sm:$0xff]
    %v51 = vld [vmem:[%s1 + $0xb8] sm:$0xff]
    %v52 = vld [vmem:[%s1 + $0xc0] sm:$0xff]
    %v53 = vld [vmem:[%s1 + $0xc8] sm:$0xff]
    %v54 = vld [vmem:[%s1 + $0xd0] sm:$0xff]
    %v55 = vld [vmem:[%s1 + $0xd8] sm:$0xff]
    %v56 = vld [vmem:[%s1 + $0xe0] sm:$0xff]
    %v57 = vld [vmem:[%s1 + $0xe8] sm:$0xff]
    %v58 = vld [vmem:[%s1 + $0xf0] sm:$0xff]
    %v59 = vld [vmem:[%s1 + $0xf8] sm:$0xff]
    %v60 = vld [vmem:[%s1 + $0x100] sm:$0xff]
    %v61 = vld [vmem:[%s1 + $0x108] sm:$0xff]
    %v62 = vld [vmem:[%s1 + $0x110] sm:$0xff]
    %v63 = vld [vmem:[%s1 + $0x118] sm:$0xff]
    %v64 = vld [vmem:[%s1 + $0x120] sm:$0xff]
    %v65 = vld [vmem:[%s1 + $0x128] sm:$0xff]
    %v66 = vld [vmem:[%s1 + $0x130] sm:$0xff]
    %v67 = vld [vmem:[%s1 + $0x138] sm:$0xff]
    %v68 = vld [vmem:[%s1 + $0x140] sm:$0xff]
    %v69 = vld [vmem:[%s1 + $0x148] sm:$0xff]
    %v70 = vld [vmem:[%s1 + $0x150] sm:$0xff]
    %v71 = vld [vmem:[%s1 + $0x158] sm:$0xff]
    %v72 = vld [vmem:[%s1 + $0x160] sm:$0xff]
    %v73 = vld [vmem:[%s1 + $0x168] sm:$0xff]
    %v74 = vld [vmem:[%s1 + $0x170] sm:$0xff]
    %v75 = vld [vmem:[%s1 + $0x178] sm:$0xff]
    %v76 = vld [vmem:[%s1 + $0x180] sm:$0xff]
    %v77 = vld [vmem:[%s1 + $0x188] sm:$0xff]
    %v78 = vld [vmem:[%s1 + $0x190] sm:$0xff]
    %v79 = vld [vmem:[%s1 + $0x198] sm:$0xff]
    %v80 = vld [vmem:[%s1 + $0x1a0] sm:$0xff]
    %v81 = vld [vmem:[%s1 + $0x1a8] sm:$0xff]
    %v82 = vld [vmem:[%s1 + $0x1b0] sm:$0xff]
    %v83 = vld [vmem:[%s1 + $0x1b8] sm:$0xff]
    %v84 = vld [vmem:[%s1 + $0x1c0] sm:$0xff]
    %v85 = vld [vmem:[%s1 + $0x1c8] sm:$0xff]
    %v86 = vld [vmem:[%s1 + $0x1d0] sm:$0xff]
    %v87 = vld [vmem:[%s1 + $0x1d8] sm:$0xff]
    %v88 = vld [vmem:[%s1 + $0x1e0] sm:$0xff]
    %v89 = vld [vmem:[%s1 + $0x1e8] sm:$0xff]
    %v90 = vld [vmem:[%s1 + $0x1f0] sm:$0xff]
    %v91 = vld [vmem:[%s1 + $0x1f8] sm:$0xff]
    %v92 = vld [vmem:[%s2] sm:$0xff]
    %v93 = vld [vmem:[%s2 + $0x8] sm:$0xff]
    %v94 = vld [vmem:[%s2 + $0x10] sm:$0xff]
    %v95 = vld [vmem:[%s2 + $0x18] sm:$0xff]
    %v96 = vld [vmem:[%s2 + $0x20] sm:$0xff]
    %v97 = vld [vmem:[%s2 + $0x28] sm:$0xff]
    %v98 = vld [vmem:[%s2 + $0x30] sm:$0xff]
    %v99 = vld [vmem:[%s2 + $0x38] sm:$0xff]
    %v100 = vld [vmem:[%s2 + $0x40] sm:$0xff]
    %v101 = vld [vmem:[%s2 + $0x48] sm:$0xff]
    %v102 = vld [vmem:[%s2 + $0x50] sm:$0xff]
    %v103 = vld [vmem:[%s2 + $0x58] sm:$0xff]
    %v104 = vld [vmem:[%s2 + $0x60] sm:$0xff]
    %v105 = vld [vmem:[%s2 + $0x68] sm:$0xff]
    %v106 = vld [vmem:[%s2 + $0x70] sm:$0xff]
    %v107 = vld [vmem:[%s2 + $0x78] sm:$0xff]
    %v108 = vld [vmem:[%s2 + $0x80] sm:$0xff]
    %v109 = vld [vmem:[%s2 + $0x88] sm:$0xff]
    %v110 = vld [vmem:[%s2 + $0x90] sm:$0xff]
    %v111 = vld [vmem:[%s2 + $0x98] sm:$0xff]
    %v112 = vld [vmem:[%s2 + $0xa0] sm:$0xff]
    %v113 = vld [vmem:[%s2 + $0xa8] sm:$0xff]
    %v114 = vld [vmem:[%s2 + $0xb0] sm:$0xff]
    %v115 = vld [vmem:[%s2 + $0xb8] sm:$0xff]
    %v116 = vld [vmem:[%s2 + $0xc0] sm:$0xff]
    %v117 = vld [vmem:[%s2 + $0xc8] sm:$0xff]
    %v118 = vld [vmem:[%s2 + $0xd0] sm:$0xff]
    %v119 = vld [vmem:[%s2 + $0xd8] sm:$0xff]
    %v120 = vld [vmem:[%s2 + $0xe0] sm:$0xff]
    %v121 = vld [vmem:[%s2 + $0xe8] sm:$0xff]
    %v122 = vld [vmem:[%s2 + $0xf0] sm:$0xff]
    %v123 = vld [vmem:[%s2 + $0xf8] sm:$0xff]
    %v124 = vld [vmem:[%s2 + $0x100] sm:$0xff]
    %v125 = vld [vmem:[%s2 + $0x108] sm:$0xff]
    %v126 = vld [vmem:[%s2 + $0x110] sm:$0xff]
    %v127 = vld [vmem:[%s2 + $0x118] sm:$0xff]
    %v128 = vld [vmem:[%s2 + $0x120] sm:$0xff]
    %v129 = vld [vmem:[%s2 + $0x128] sm:$0xff]
    %v130 = vld [vmem:[%s2 + $0x130] sm:$0xff]
    %v131 = vld [vmem:[%s2 + $0x138] sm:$0xff]
    %v132 = vld [vmem:[%s2 + $0x140] sm:$0xff]
    %v133 = vld [vmem:[%s2 + $0x148] sm:$0xff]
    %v134 = vld [vmem:[%s2 + $0x150] sm:$0xff]
    %v135 = vld [vmem:[%s2 + $0x158] sm:$0xff]
    %v136 = vld [vmem:[%s2 + $0x160] sm:$0xff]
    %v137 = vld [vmem:[%s2 + $0x168] sm:$0xff]
    %v138 = vld [vmem:[%s2 + $0x170] sm:$0xff]
    %v139 = vld [vmem:[%s2 + $0x178] sm:$0xff]
    %v140 = vld [vmem:[%s2 + $0x180] sm:$0xff]
    %v141 = vld [vmem:[%s2 + $0x188] sm:$0xff]
    %v142 = vld [vmem:[%s2 + $0x190] sm:$0xff]
    %v143 = vld [vmem:[%s2 + $0x198] sm:$0xff]
    %v144 = vld [vmem:[%s2 + $0x1a0] sm:$0xff]
    %v145 = vld [vmem:[%s2 + $0x1a8] sm:$0xff]
    %v146 = vld [vmem:[%s2 + $0x1b0] sm:$0xff]
    %v147 = vld [vmem:[%s2 + $0x1b8] sm:$0xff]
    %v148 = vld [vmem:[%s2 + $0x1c0] sm:$0xff]
    %v149 = vld [vmem:[%s2 + $0x1c8] sm:$0xff]
    %v150 = vld [vmem:[%s2 + $0x1d0] sm:$0xff]
    %v151 = vld [vmem:[%s2 + $0x1d8] sm:$0xff]
    %v152 = vld [vmem:[%s2 + $0x1e0] sm:$0xff]
    %v153 = vld [vmem:[%s2 + $0x1e8] sm:$0xff]
    %v154 = vld [vmem:[%s2 + $0x1f0] sm:$0xff]
    %v155 = vld [vmem:[%s2 + $0x1f8] sm:$0xff]
    %157 = vset.pattern.permute.xlu0 0
    %158 = vperm.xlu0 %157, %v92
    %v159 = vpop.permute.xlu0 %158
    %162 = vset.pattern.permute.xlu0 0
    %163 = vperm.xlu0 %162, %v93
    %v164 = vpop.permute.xlu0 %163
    %167 = vset.pattern.permute.xlu0 0
    %168 = vperm.xlu0 %167, %v94
    %v169 = vpop.permute.xlu0 %168
    %172 = vset.pattern.permute.xlu0 0
    %173 = vperm.xlu0 %172, %v95
    %v174 = vpop.permute.xlu0 %173
    %177 = vset.pattern.permute.xlu0 0
    %178 = vperm.xlu0 %177, %v96
    %v179 = vpop.permute.xlu0 %178
    %182 = vset.pattern.permute.xlu0 0
    %183 = vperm.xlu0 %182, %v97
    %v184 = vpop.permute.xlu0 %183
    %187 = vset.pattern.permute.xlu0 0
    %188 = vperm.xlu0 %187, %v98
    %v189 = vpop.permute.xlu0 %188
    %192 = vset.pattern.permute.xlu0 0
    %193 = vperm.xlu0 %192, %v99
    %v194 = vpop.permute.xlu0 %193
    %197 = vset.pattern.permute.xlu0 0
    %198 = vperm.xlu0 %197, %v100
    %v199 = vpop.permute.xlu0 %198
    %202 = vset.pattern.permute.xlu0 0
    %203 = vperm.xlu0 %202, %v101
    %v204 = vpop.permute.xlu0 %203
    %207 = vset.pattern.permute.xlu0 0
    %208 = vperm.xlu0 %207, %v102
    %v209 = vpop.permute.xlu0 %208
    %212 = vset.pattern.permute.xlu0 0
    %213 = vperm.xlu0 %212, %v103
    %v214 = vpop.permute.xlu0 %213
    %217 = vset.pattern.permute.xlu0 0
    %218 = vperm.xlu0 %217, %v104
    %v219 = vpop.permute.xlu0 %218
    %222 = vset.pattern.permute.xlu0 0
    %223 = vperm.xlu0 %222, %v105
    %v224 = vpop.permute.xlu0 %223
    %227 = vset.pattern.permute.xlu0 0
    %228 = vperm.xlu0 %227, %v106
    %v229 = vpop.permute.xlu0 %228
    %232 = vset.pattern.permute.xlu0 0
    %233 = vperm.xlu0 %232, %v107
    %v234 = vpop.permute.xlu0 %233
    %237 = vset.pattern.permute.xlu0 0
    %238 = vperm.xlu0 %237, %v108
    %v239 = vpop.permute.xlu0 %238
    %242 = vset.pattern.permute.xlu0 0
    %243 = vperm.xlu0 %242, %v109
    %v244 = vpop.permute.xlu0 %243
    %247 = vset.pattern.permute.xlu0 0
    %248 = vperm.xlu0 %247, %v110
    %v249 = vpop.permute.xlu0 %248
    %252 = vset.pattern.permute.xlu0 0
    %253 = vperm.xlu0 %252, %v111
    %v254 = vpop.permute.xlu0 %253
    %257 = vset.pattern.permute.xlu0 0
    %258 = vperm.xlu0 %257, %v112
    %v259 = vpop.permute.xlu0 %258
    %262 = vset.pattern.permute.xlu0 0
    %263 = vperm.xlu0 %262, %v113
    %v264 = vpop.permute.xlu0 %263
    %267 = vset.pattern.permute.xlu0 0
    %268 = vperm.xlu0 %267, %v114
    %v269 = vpop.permute.xlu0 %268
    %272 = vset.pattern.permute.xlu0 0
    %273 = vperm.xlu0 %272, %v115
    %v274 = vpop.permute.xlu0 %273
    %277 = vset.pattern.permute.xlu0 0
    %278 = vperm.xlu0 %277, %v116
    %v279 = vpop.permute.xlu0 %278
    %282 = vset.pattern.permute.xlu0 0
    %283 = vperm.xlu0 %282, %v117
    %v284 = vpop.permute.xlu0 %283
    %287 = vset.pattern.permute.xlu0 0
    %288 = vperm.xlu0 %287, %v118
    %v289 = vpop.permute.xlu0 %288
    %292 = vset.pattern.permute.xlu0 0
    %293 = vperm.xlu0 %292, %v119
    %v294 = vpop.permute.xlu0 %293
    %297 = vset.pattern.permute.xlu0 0
    %298 = vperm.xlu0 %297, %v120
    %v299 = vpop.permute.xlu0 %298
    %302 = vset.pattern.permute.xlu0 0
    %303 = vperm.xlu0 %302, %v121
    %v304 = vpop.permute.xlu0 %303
    %307 = vset.pattern.permute.xlu0 0
    %308 = vperm.xlu0 %307, %v122
    %v309 = vpop.permute.xlu0 %308
    %312 = vset.pattern.permute.xlu0 0
    %313 = vperm.xlu0 %312, %v123
    %v314 = vpop.permute.xlu0 %313
    %317 = vset.pattern.permute.xlu0 0
    %318 = vperm.xlu0 %317, %v124
    %v319 = vpop.permute.xlu0 %318
    %322 = vset.pattern.permute.xlu0 0
    %323 = vperm.xlu0 %322, %v125
    %v324 = vpop.permute.xlu0 %323
    %327 = vset.pattern.permute.xlu0 0
    %328 = vperm.xlu0 %327, %v126
    %v329 = vpop.permute.xlu0 %328
    %332 = vset.pattern.permute.xlu0 0
    %333 = vperm.xlu0 %332, %v127
    %v334 = vpop.permute.xlu0 %333
    %337 = vset.pattern.permute.xlu0 0
    %338 = vperm.xlu0 %337, %v128
    %v339 = vpop.permute.xlu0 %338
    %342 = vset.pattern.permute.xlu0 0
    %343 = vperm.xlu0 %342, %v129
    %v344 = vpop.permute.xlu0 %343
    %347 = vset.pattern.permute.xlu0 0
    %348 = vperm.xlu0 %347, %v130
    %v349 = vpop.permute.xlu0 %348
    %352 = vset.pattern.permute.xlu0 0
    %353 = vperm.xlu0 %352, %v131
    %v354 = vpop.permute.xlu0 %353
    %357 = vset.pattern.permute.xlu0 0
    %358 = vperm.xlu0 %357, %v132
    %v359 = vpop.permute.xlu0 %358
    %362 = vset.pattern.permute.xlu0 0
    %363 = vperm.xlu0 %362, %v133
    %v364 = vpop.permute.xlu0 %363
    %367 = vset.pattern.permute.xlu0 0
    %368 = vperm.xlu0 %367, %v134
    %v369 = vpop.permute.xlu0 %368
    %372 = vset.pattern.permute.xlu0 0
    %373 = vperm.xlu0 %372, %v135
    %v374 = vpop.permute.xlu0 %373
    %377 = vset.pattern.permute.xlu0 0
    %378 = vperm.xlu0 %377, %v136
    %v379 = vpop.permute.xlu0 %378
    %382 = vset.pattern.permute.xlu0 0
    %383 = vperm.xlu0 %382, %v137
    %v384 = vpop.permute.xlu0 %383
    %387 = vset.pattern.permute.xlu0 0
    %388 = vperm.xlu0 %387, %v138
    %v389 = vpop.permute.xlu0 %388
    %392 = vset.pattern.permute.xlu0 0
    %393 = vperm.xlu0 %392, %v139
    %v394 = vpop.permute.xlu0 %393
    %397 = vset.pattern.permute.xlu0 0
    %398 = vperm.xlu0 %397, %v140
    %v399 = vpop.permute.xlu0 %398
    %402 = vset.pattern.permute.xlu0 0
    %403 = vperm.xlu0 %402, %v141
    %v404 = vpop.permute.xlu0 %403
    %407 = vset.pattern.permute.xlu0 0
    %408 = vperm.xlu0 %407, %v142
    %v409 = vpop.permute.xlu0 %408
    %412 = vset.pattern.permute.xlu0 0
    %413 = vperm.xlu0 %412, %v143
    %v414 = vpop.permute.xlu0 %413
    %417 = vset.pattern.permute.xlu0 0
    %418 = vperm.xlu0 %417, %v144
    %v419 = vpop.permute.xlu0 %418
    %422 = vset.pattern.permute.xlu0 0
    %423 = vperm.xlu0 %422, %v145
    %v424 = vpop.permute.xlu0 %423
    %427 = vset.pattern.permute.xlu0 0
    %428 = vperm.xlu0 %427, %v146
    %v429 = vpop.permute.xlu0 %428
    %432 = vset.pattern.permute.xlu0 0
    %433 = vperm.xlu0 %432, %v147
    %v434 = vpop.permute.xlu0 %433
    %437 = vset.pattern.permute.xlu0 0
    %438 = vperm.xlu0 %437, %v148
    %v439 = vpop.permute.xlu0 %438
    %442 = vset.pattern.permute.xlu0 0
    %443 = vperm.xlu0 %442, %v149
    %v444 = vpop.permute.xlu0 %443
    %447 = vset.pattern.permute.xlu0 0
    %448 = vperm.xlu0 %447, %v150
    %v449 = vpop.permute.xlu0 %448
    %452 = vset.pattern.permute.xlu0 0
    %453 = vperm.xlu0 %452, %v151
    %v454 = vpop.permute.xlu0 %453
    %457 = vset.pattern.permute.xlu0 0
    %458 = vperm.xlu0 %457, %v152
    %v459 = vpop.permute.xlu0 %458
    %462 = vset.pattern.permute.xlu0 0
    %463 = vperm.xlu0 %462, %v153
    %v464 = vpop.permute.xlu0 %463
    %467 = vset.pattern.permute.xlu0 0
    %468 = vperm.xlu0 %467, %v154
    %v469 = vpop.permute.xlu0 %468
    %472 = vset.pattern.permute.xlu0 0
    %473 = vperm.xlu0 %472, %v155
    %v474 = vpop.permute.xlu0 %473
    %vm476 = vcmask 392192
    %v478 = vsel %vm476, %v28, 0
    %v481 = vsel %vm476, %v29, 0
    %v484 = vsel %vm476, %v30, 0
    %v487 = vsel %vm476, %v31, 0
    %v490 = vsel %vm476, %v32, 0
    %v493 = vsel %vm476, %v33, 0
    %v496 = vsel %vm476, %v34, 0
    %v499 = vsel %vm476, %v35, 0
    %v502 = vsel %vm476, %v36, 0
    %v505 = vsel %vm476, %v37, 0
    %v508 = vsel %vm476, %v38, 0
    %v511 = vsel %vm476, %v39, 0
    %v514 = vsel %vm476, %v40, 0
    %v517 = vsel %vm476, %v41, 0
    %v520 = vsel %vm476, %v42, 0
    %v523 = vsel %vm476, %v43, 0
    %v526 = vsel %vm476, %v44, 0
    %v529 = vsel %vm476, %v45, 0
    %v532 = vsel %vm476, %v46, 0
    %v535 = vsel %vm476, %v47, 0
    %v538 = vsel %vm476, %v48, 0
    %v541 = vsel %vm476, %v49, 0
    %v544 = vsel %vm476, %v50, 0
    %v547 = vsel %vm476, %v51, 0
    %v550 = vsel %vm476, %v52, 0
    %v553 = vsel %vm476, %v53, 0
    %v556 = vsel %vm476, %v54, 0
    %v559 = vsel %vm476, %v55, 0
    %v562 = vsel %vm476, %v56, 0
    %v565 = vsel %vm476, %v57, 0
    %v568 = vsel %vm476, %v58, 0
    %v571 = vsel %vm476, %v59, 0
    %v574 = vsel %vm476, %v60, 0
    %v577 = vsel %vm476, %v61, 0
    %v580 = vsel %vm476, %v62, 0
    %v583 = vsel %vm476, %v63, 0
    %v586 = vsel %vm476, %v64, 0
    %v589 = vsel %vm476, %v65, 0
    %v592 = vsel %vm476, %v66, 0
    %v595 = vsel %vm476, %v67, 0
    %v598 = vsel %vm476, %v68, 0
    %v601 = vsel %vm476, %v69, 0
    %v604 = vsel %vm476, %v70, 0
    %v607 = vsel %vm476, %v71, 0
    %v610 = vsel %vm476, %v72, 0
    %v613 = vsel %vm476, %v73, 0
    %v616 = vsel %vm476, %v74, 0
    %v619 = vsel %vm476, %v75, 0
    %v622 = vsel %vm476, %v76, 0
    %v625 = vsel %vm476, %v77, 0
    %v628 = vsel %vm476, %v78, 0
    %v631 = vsel %vm476, %v79, 0
    %v634 = vsel %vm476, %v80, 0
    %v637 = vsel %vm476, %v81, 0
    %v640 = vsel %vm476, %v82, 0
    %v643 = vsel %vm476, %v83, 0
    %v646 = vsel %vm476, %v84, 0
    %v649 = vsel %vm476, %v85, 0
    %v652 = vsel %vm476, %v86, 0
    %v655 = vsel %vm476, %v87, 0
    %v658 = vsel %vm476, %v88, 0
    %v661 = vsel %vm476, %v89, 0
    %v664 = vsel %vm476, %v90, 0
    %v667 = vsel %vm476, %v91, 0
    %669 = vmatprep.subr.mxu0 0.0
    %670 = vmatpush1.msra.mxu0 0.0
    %671 = vmatprep.subr.mxu0 0.0
    %672 = vmatpush1.msra.mxu0 0.0
    %673 = vmatprep.subr.mxu0 0.0
    %674 = vmatpush1.msra.mxu0 0.0
    %675 = vmatprep.subr.mxu0 0.0
    %676 = vmatpush1.msra.mxu0 0.0
    %677 = vmatprep.subr.mxu0 0.0
    %678 = vmatpush1.msra.mxu0 0.0
    %679 = vmatprep.subr.mxu0 0.0
    %680 = vmatpush1.msra.mxu0 0.0
    %681 = vmatprep.subr.mxu0 0.0
    %682 = vmatpush1.msra.mxu0 0.0
    %683 = vmatprep.subr.mxu0 0.0
    %684 = vmatpush1.msra.mxu0 0.0
    %685 = vmatprep.subr.mxu0 0.0
    %686 = vmatpush1.msra.mxu0 0.0
    %687 = vmatprep.subr.mxu0 0.0
    %688 = vmatpush1.msra.mxu0 0.0
    %689 = vmatprep.subr.mxu0 0.0
    %690 = vmatpush1.msra.mxu0 %v27
    %691 = vmatprep.subr.mxu0 0.0
    %692 = vmatpush1.msra.mxu0 %v26
    %693 = vmatprep.subr.mxu0 0.0
    %694 = vmatpush1.msra.mxu0 %v25
    %695 = vmatprep.subr.mxu0 0.0
    %696 = vmatpush1.msra.mxu0 %v24
    %697 = vmatprep.subr.mxu0 0.0
    %698 = vmatpush1.msra.mxu0 %v23
    %699 = vmatprep.subr.mxu0 0.0
    %700 = vmatpush1.msra.mxu0 %v22
    %701 = vmatprep.subr.mxu0 0.0
    %702 = vmatpush2.msra.mxu0 0.0
    %703 = vmatprep.subr.mxu0 0.0
    %704 = vmatpush2.msra.mxu0 0.0
    %705 = vmatprep.subr.mxu0 0.0
    %706 = vmatpush2.msra.mxu0 0.0
    %707 = vmatprep.subr.mxu0 0.0
    %708 = vmatpush2.msra.mxu0 0.0
    %709 = vmatprep.subr.mxu0 0.0
    %710 = vmatpush2.msra.mxu0 0.0
    %711 = vmatprep.subr.mxu0 0.0
    %712 = vmatpush2.msra.mxu0 0.0
    %713 = vmatprep.subr.mxu0 0.0
    %714 = vmatpush2.msra.mxu0 0.0
    %715 = vmatprep.subr.mxu0 0.0
    %716 = vmatpush2.msra.mxu0 0.0
    %717 = vmatprep.subr.mxu0 0.0
    %718 = vmatpush2.msra.mxu0 0.0
    %719 = vmatprep.subr.mxu0 0.0
    %720 = vmatpush2.msra.mxu0 0.0
    %721 = vmatprep.subr.mxu0 0.0
    %722 = vmatpush2.msra.mxu0 0.0
    %723 = vmatprep.subr.mxu0 0.0
    %724 = vmatpush2.msra.mxu0 0.0
    %725 = vmatprep.subr.mxu0 0.0
    %726 = vmatpush2.msra.mxu0 0.0
    %727 = vmatprep.subr.mxu0 0.0
    %728 = vmatpush2.msra.mxu0 0.0
    %729 = vmatprep.subr.mxu0 0.0
    %730 = vmatpush2.msra.mxu0 0.0
    %731 = vmatprep.subr.mxu0 0.0
    %732 = vmatpush2.msra.mxu0 0.0
    %733 = vmatprep.mubr.f32.mxu0 0.0
    %734 = vmatmul.mubr.f32.gmra.mxu0 %v478
    %v735 = vpop.f32.mrf.mxu0
    %v736 = vadd.f32 %v159, %v735
    %v737 = vpop.f32.mrf.mxu0
    %738 = vmatprep.mubr.f32.mxu0 0.0
    %739 = vmatmul.mubr.f32.gmra.mxu0 %v481
    %v740 = vpop.f32.mrf.mxu0
    %v741 = vadd.f32 %v164, %v740
    %v742 = vpop.f32.mrf.mxu0
    %743 = vmatprep.mubr.f32.mxu0 0.0
    %744 = vmatmul.mubr.f32.gmra.mxu0 %v484
    %v745 = vpop.f32.mrf.mxu0
    %v746 = vadd.f32 %v169, %v745
    %v747 = vpop.f32.mrf.mxu0
    %748 = vmatprep.mubr.f32.mxu0 0.0
    %749 = vmatmul.mubr.f32.gmra.mxu0 %v487
    %v750 = vpop.f32.mrf.mxu0
    %v751 = vadd.f32 %v174, %v750
    %v752 = vpop.f32.mrf.mxu0
    %753 = vmatprep.mubr.f32.mxu0 0.0
    %754 = vmatmul.mubr.f32.gmra.mxu0 %v490
    %v755 = vpop.f32.mrf.mxu0
    %v756 = vadd.f32 %v179, %v755
    %v757 = vpop.f32.mrf.mxu0
    %758 = vmatprep.mubr.f32.mxu0 0.0
    %759 = vmatmul.mubr.f32.gmra.mxu0 %v493
    %v760 = vpop.f32.mrf.mxu0
    %v761 = vadd.f32 %v184, %v760
    %v762 = vpop.f32.mrf.mxu0
    %763 = vmatprep.mubr.f32.mxu0 0.0
    %764 = vmatmul.mubr.f32.gmra.mxu0 %v496
    %v765 = vpop.f32.mrf.mxu0
    %v766 = vadd.f32 %v189, %v765
    %v767 = vpop.f32.mrf.mxu0
    %768 = vmatprep.mubr.f32.mxu0 0.0
    %769 = vmatmul.mubr.f32.gmra.mxu0 %v499
    %v770 = vpop.f32.mrf.mxu0
    %v771 = vadd.f32 %v194, %v770
    %v772 = vpop.f32.mrf.mxu0
    %773 = vmatprep.mubr.f32.mxu0 0.0
    %774 = vmatmul.mubr.f32.gmra.mxu0 %v502
    %v775 = vpop.f32.mrf.mxu0
    %v776 = vadd.f32 %v199, %v775
    %v777 = vpop.f32.mrf.mxu0
    %778 = vmatprep.mubr.f32.mxu0 0.0
    %779 = vmatmul.mubr.f32.gmra.mxu0 %v505
    %v780 = vpop.f32.mrf.mxu0
    %v781 = vadd.f32 %v204, %v780
    %v782 = vpop.f32.mrf.mxu0
    %783 = vmatprep.mubr.f32.mxu0 0.0
    %784 = vmatmul.mubr.f32.gmra.mxu0 %v508
    %v785 = vpop.f32.mrf.mxu0
    %v786 = vadd.f32 %v209, %v785
    %v787 = vpop.f32.mrf.mxu0
    %788 = vmatprep.mubr.f32.mxu0 0.0
    %789 = vmatmul.mubr.f32.gmra.mxu0 %v511
    %v790 = vpop.f32.mrf.mxu0
    %v791 = vadd.f32 %v214, %v790
    %v792 = vpop.f32.mrf.mxu0
    %793 = vmatprep.mubr.f32.mxu0 0.0
    %794 = vmatmul.mubr.f32.gmra.mxu0 %v514
    %v795 = vpop.f32.mrf.mxu0
    %v796 = vadd.f32 %v219, %v795
    %v797 = vpop.f32.mrf.mxu0
    %798 = vmatprep.mubr.f32.mxu0 0.0
    %799 = vmatmul.mubr.f32.gmra.mxu0 %v517
    %v800 = vpop.f32.mrf.mxu0
    %v801 = vadd.f32 %v224, %v800
    %v802 = vpop.f32.mrf.mxu0
    %803 = vmatprep.mubr.f32.mxu0 0.0
    %804 = vmatmul.mubr.f32.gmra.mxu0 %v520
    %v805 = vpop.f32.mrf.mxu0
    %v806 = vadd.f32 %v229, %v805
    %v807 = vpop.f32.mrf.mxu0
    %808 = vmatprep.mubr.f32.mxu0 0.0
    %809 = vmatmul.mubr.f32.gmra.mxu0 %v523
    %v810 = vpop.f32.mrf.mxu0
    %v811 = vadd.f32 %v234, %v810
    %v812 = vpop.f32.mrf.mxu0
    %813 = vmatprep.mubr.f32.mxu0 0.0
    %814 = vmatmul.mubr.f32.gmra.mxu0 %v526
    %v815 = vpop.f32.mrf.mxu0
    %v816 = vadd.f32 %v239, %v815
    %v817 = vpop.f32.mrf.mxu0
    %818 = vmatprep.mubr.f32.mxu0 0.0
    %819 = vmatmul.mubr.f32.gmra.mxu0 %v529
    %v820 = vpop.f32.mrf.mxu0
    %v821 = vadd.f32 %v244, %v820
    %v822 = vpop.f32.mrf.mxu0
    %823 = vmatprep.mubr.f32.mxu0 0.0
    %824 = vmatmul.mubr.f32.gmra.mxu0 %v532
    %v825 = vpop.f32.mrf.mxu0
    %v826 = vadd.f32 %v249, %v825
    %v827 = vpop.f32.mrf.mxu0
    %828 = vmatprep.mubr.f32.mxu0 0.0
    %829 = vmatmul.mubr.f32.gmra.mxu0 %v535
    %v830 = vpop.f32.mrf.mxu0
    %v831 = vadd.f32 %v254, %v830
    %v832 = vpop.f32.mrf.mxu0
    %833 = vmatprep.mubr.f32.mxu0 0.0
    %834 = vmatmul.mubr.f32.gmra.mxu0 %v538
    %v835 = vpop.f32.mrf.mxu0
    %v836 = vadd.f32 %v259, %v835
    %v837 = vpop.f32.mrf.mxu0
    %838 = vmatprep.mubr.f32.mxu0 0.0
    %839 = vmatmul.mubr.f32.gmra.mxu0 %v541
    %v840 = vpop.f32.mrf.mxu0
    %v841 = vadd.f32 %v264, %v840
    %v842 = vpop.f32.mrf.mxu0
    %843 = vmatprep.mubr.f32.mxu0 0.0
    %844 = vmatmul.mubr.f32.gmra.mxu0 %v544
    %v845 = vpop.f32.mrf.mxu0
    %v846 = vadd.f32 %v269, %v845
    %v847 = vpop.f32.mrf.mxu0
    %848 = vmatprep.mubr.f32.mxu0 0.0
    %849 = vmatmul.mubr.f32.gmra.mxu0 %v547
    %v850 = vpop.f32.mrf.mxu0
    %v851 = vadd.f32 %v274, %v850
    %v852 = vpop.f32.mrf.mxu0
    %853 = vmatprep.mubr.f32.mxu0 0.0
    %854 = vmatmul.mubr.f32.gmra.mxu0 %v550
    %v855 = vpop.f32.mrf.mxu0
    %v856 = vadd.f32 %v279, %v855
    %v857 = vpop.f32.mrf.mxu0
    %858 = vmatprep.mubr.f32.mxu0 0.0
    %859 = vmatmul.mubr.f32.gmra.mxu0 %v553
    %v860 = vpop.f32.mrf.mxu0
    %v861 = vadd.f32 %v284, %v860
    %v862 = vpop.f32.mrf.mxu0
    %863 = vmatprep.mubr.f32.mxu0 0.0
    %864 = vmatmul.mubr.f32.gmra.mxu0 %v556
    %v865 = vpop.f32.mrf.mxu0
    %v866 = vadd.f32 %v289, %v865
    %v867 = vpop.f32.mrf.mxu0
    %868 = vmatprep.mubr.f32.mxu0 0.0
    %869 = vmatmul.mubr.f32.gmra.mxu0 %v559
    %v870 = vpop.f32.mrf.mxu0
    %v871 = vadd.f32 %v294, %v870
    %v872 = vpop.f32.mrf.mxu0
    %873 = vmatprep.mubr.f32.mxu0 0.0
    %874 = vmatmul.mubr.f32.gmra.mxu0 %v562
    %v875 = vpop.f32.mrf.mxu0
    %v876 = vadd.f32 %v299, %v875
    %v877 = vpop.f32.mrf.mxu0
    %878 = vmatprep.mubr.f32.mxu0 0.0
    %879 = vmatmul.mubr.f32.gmra.mxu0 %v565
    %v880 = vpop.f32.mrf.mxu0
    %v881 = vadd.f32 %v304, %v880
    %v882 = vpop.f32.mrf.mxu0
    %883 = vmatprep.mubr.f32.mxu0 0.0
    %884 = vmatmul.mubr.f32.gmra.mxu0 %v568
    %v885 = vpop.f32.mrf.mxu0
    %v886 = vadd.f32 %v309, %v885
    %v887 = vpop.f32.mrf.mxu0
    %888 = vmatprep.mubr.f32.mxu0 0.0
    %889 = vmatmul.mubr.f32.gmra.mxu0 %v571
    %v890 = vpop.f32.mrf.mxu0
    %v891 = vadd.f32 %v314, %v890
    %v892 = vpop.f32.mrf.mxu0
    %893 = vmatprep.mubr.f32.mxu0 0.0
    %894 = vmatmul.mubr.f32.gmra.mxu0 %v574
    %v895 = vpop.f32.mrf.mxu0
    %v896 = vadd.f32 %v319, %v895
    %v897 = vpop.f32.mrf.mxu0
    %898 = vmatprep.mubr.f32.mxu0 0.0
    %899 = vmatmul.mubr.f32.gmra.mxu0 %v577
    %v900 = vpop.f32.mrf.mxu0
    %v901 = vadd.f32 %v324, %v900
    %v902 = vpop.f32.mrf.mxu0
    %903 = vmatprep.mubr.f32.mxu0 0.0
    %904 = vmatmul.mubr.f32.gmra.mxu0 %v580
    %v905 = vpop.f32.mrf.mxu0
    %v906 = vadd.f32 %v329, %v905
    %v907 = vpop.f32.mrf.mxu0
    %908 = vmatprep.mubr.f32.mxu0 0.0
    %909 = vmatmul.mubr.f32.gmra.mxu0 %v583
    %v910 = vpop.f32.mrf.mxu0
    %v911 = vadd.f32 %v334, %v910
    %v912 = vpop.f32.mrf.mxu0
    %913 = vmatprep.mubr.f32.mxu0 0.0
    %914 = vmatmul.mubr.f32.gmra.mxu0 %v586
    %v915 = vpop.f32.mrf.mxu0
    %v916 = vadd.f32 %v339, %v915
    %v917 = vpop.f32.mrf.mxu0
    %918 = vmatprep.mubr.f32.mxu0 0.0
    %919 = vmatmul.mubr.f32.gmra.mxu0 %v589
    %v920 = vpop.f32.mrf.mxu0
    %v921 = vadd.f32 %v344, %v920
    %v922 = vpop.f32.mrf.mxu0
    %923 = vmatprep.mubr.f32.mxu0 0.0
    %924 = vmatmul.mubr.f32.gmra.mxu0 %v592
    %v925 = vpop.f32.mrf.mxu0
    %v926 = vadd.f32 %v349, %v925
    %v927 = vpop.f32.mrf.mxu0
    %928 = vmatprep.mubr.f32.mxu0 0.0
    %929 = vmatmul.mubr.f32.gmra.mxu0 %v595
    %v930 = vpop.f32.mrf.mxu0
    %v931 = vadd.f32 %v354, %v930
    %v932 = vpop.f32.mrf.mxu0
    %933 = vmatprep.mubr.f32.mxu0 0.0
    %934 = vmatmul.mubr.f32.gmra.mxu0 %v598
    %v935 = vpop.f32.mrf.mxu0
    %v936 = vadd.f32 %v359, %v935
    %v937 = vpop.f32.mrf.mxu0
    %938 = vmatprep.mubr.f32.mxu0 0.0
    %939 = vmatmul.mubr.f32.gmra.mxu0 %v601
    %v940 = vpop.f32.mrf.mxu0
    %v941 = vadd.f32 %v364, %v940
    %v942 = vpop.f32.mrf.mxu0
    %943 = vmatprep.mubr.f32.mxu0 0.0
    %944 = vmatmul.mubr.f32.gmra.mxu0 %v604
    %v945 = vpop.f32.mrf.mxu0
    %v946 = vadd.f32 %v369, %v945
    %v947 = vpop.f32.mrf.mxu0
    %948 = vmatprep.mubr.f32.mxu0 0.0
    %949 = vmatmul.mubr.f32.gmra.mxu0 %v607
    %v950 = vpop.f32.mrf.mxu0
    %v951 = vadd.f32 %v374, %v950
    %v952 = vpop.f32.mrf.mxu0
    %953 = vmatprep.mubr.f32.mxu0 0.0
    %954 = vmatmul.mubr.f32.gmra.mxu0 %v610
    %v955 = vpop.f32.mrf.mxu0
    %v956 = vadd.f32 %v379, %v955
    %v957 = vpop.f32.mrf.mxu0
    %958 = vmatprep.mubr.f32.mxu0 0.0
    %959 = vmatmul.mubr.f32.gmra.mxu0 %v613
    %v960 = vpop.f32.mrf.mxu0
    %v961 = vadd.f32 %v384, %v960
    %v962 = vpop.f32.mrf.mxu0
    %963 = vmatprep.mubr.f32.mxu0 0.0
    %964 = vmatmul.mubr.f32.gmra.mxu0 %v616
    %v965 = vpop.f32.mrf.mxu0
    %v966 = vadd.f32 %v389, %v965
    %v967 = vpop.f32.mrf.mxu0
    %968 = vmatprep.mubr.f32.mxu0 0.0
    %969 = vmatmul.mubr.f32.gmra.mxu0 %v619
    %v970 = vpop.f32.mrf.mxu0
    %v971 = vadd.f32 %v394, %v970
    %v972 = vpop.f32.mrf.mxu0
    %973 = vmatprep.mubr.f32.mxu0 0.0
    %974 = vmatmul.mubr.f32.gmra.mxu0 %v622
    %v975 = vpop.f32.mrf.mxu0
    %v976 = vadd.f32 %v399, %v975
    %v977 = vpop.f32.mrf.mxu0
    %978 = vmatprep.mubr.f32.mxu0 0.0
    %979 = vmatmul.mubr.f32.gmra.mxu0 %v625
    %v980 = vpop.f32.mrf.mxu0
    %v981 = vadd.f32 %v404, %v980
    %v982 = vpop.f32.mrf.mxu0
    %983 = vmatprep.mubr.f32.mxu0 0.0
    %984 = vmatmul.mubr.f32.gmra.mxu0 %v628
    %v985 = vpop.f32.mrf.mxu0
    %v986 = vadd.f32 %v409, %v985
    %v987 = vpop.f32.mrf.mxu0
    %988 = vmatprep.mubr.f32.mxu0 0.0
    %989 = vmatmul.mubr.f32.gmra.mxu0 %v631
    %v990 = vpop.f32.mrf.mxu0
    %v991 = vadd.f32 %v414, %v990
    %v992 = vpop.f32.mrf.mxu0
    %993 = vmatprep.mubr.f32.mxu0 0.0
    %994 = vmatmul.mubr.f32.gmra.mxu0 %v634
    %v995 = vpop.f32.mrf.mxu0
    %v996 = vadd.f32 %v419, %v995
    %v997 = vpop.f32.mrf.mxu0
    %998 = vmatprep.mubr.f32.mxu0 0.0
    %999 = vmatmul.mubr.f32.gmra.mxu0 %v637
    %v1000 = vpop.f32.mrf.mxu0
    %v1001 = vadd.f32 %v424, %v1000
    %v1002 = vpop.f32.mrf.mxu0
    %1003 = vmatprep.mubr.f32.mxu0 0.0
    %1004 = vmatmul.mubr.f32.gmra.mxu0 %v640
    %v1005 = vpop.f32.mrf.mxu0
    %v1006 = vadd.f32 %v429, %v1005
    %v1007 = vpop.f32.mrf.mxu0
    %1008 = vmatprep.mubr.f32.mxu0 0.0
    %1009 = vmatmul.mubr.f32.gmra.mxu0 %v643
    %v1010 = vpop.f32.mrf.mxu0
    %v1011 = vadd.f32 %v434, %v1010
    %v1012 = vpop.f32.mrf.mxu0
    %1013 = vmatprep.mubr.f32.mxu0 0.0
    %1014 = vmatmul.mubr.f32.gmra.mxu0 %v646
    %v1015 = vpop.f32.mrf.mxu0
    %v1016 = vadd.f32 %v439, %v1015
    %v1017 = vpop.f32.mrf.mxu0
    %1018 = vmatprep.mubr.f32.mxu0 0.0
    %1019 = vmatmul.mubr.f32.gmra.mxu0 %v649
    %v1020 = vpop.f32.mrf.mxu0
    %v1021 = vadd.f32 %v444, %v1020
    %v1022 = vpop.f32.mrf.mxu0
    %1023 = vmatprep.mubr.f32.mxu0 0.0
    %1024 = vmatmul.mubr.f32.gmra.mxu0 %v652
    %v1025 = vpop.f32.mrf.mxu0
    %v1026 = vadd.f32 %v449, %v1025
    %v1027 = vpop.f32.mrf.mxu0
    %1028 = vmatprep.mubr.f32.mxu0 0.0
    %1029 = vmatmul.mubr.f32.gmra.mxu0 %v655
    %v1030 = vpop.f32.mrf.mxu0
    %v1031 = vadd.f32 %v454, %v1030
    %v1032 = vpop.f32.mrf.mxu0
    %1033 = vmatprep.mubr.f32.mxu0 0.0
    %1034 = vmatmul.mubr.f32.gmra.mxu0 %v658
    %v1035 = vpop.f32.mrf.mxu0
    %v1036 = vadd.f32 %v459, %v1035
    %v1037 = vpop.f32.mrf.mxu0
    %1038 = vmatprep.mubr.f32.mxu0 0.0
    %1039 = vmatmul.mubr.f32.gmra.mxu0 %v661
    %v1040 = vpop.f32.mrf.mxu0
    %v1041 = vadd.f32 %v464, %v1040
    %v1042 = vpop.f32.mrf.mxu0
    %1043 = vmatprep.mubr.f32.mxu0 0.0
    %1044 = vmatmul.mubr.f32.gmra.mxu0 %v664
    %v1045 = vpop.f32.mrf.mxu0
    %v1046 = vadd.f32 %v469, %v1045
    %v1047 = vpop.f32.mrf.mxu0
    %1048 = vmatprep.mubr.f32.mxu0 0.0
    %1049 = vmatmul.mubr.f32.gmra.mxu0 %v667
    %v1050 = vpop.f32.mrf.mxu0
    %v1051 = vadd.f32 %v474, %v1050
    %v1052 = vpop.f32.mrf.mxu0
    %1053 = vdwg.mxu0
    %v1054 = vmax.f32 %v736, 0.0
    %v1055 = vmax.f32 %v741, 0.0
    %v1056 = vmax.f32 %v746, 0.0
    %v1057 = vmax.f32 %v751, 0.0
    %v1058 = vmax.f32 %v756, 0.0
    %v1059 = vmax.f32 %v761, 0.0
    %v1060 = vmax.f32 %v766, 0.0
    %v1061 = vmax.f32 %v771, 0.0
    %v1062 = vmax.f32 %v776, 0.0
    %v1063 = vmax.f32 %v781, 0.0
    %v1064 = vmax.f32 %v786, 0.0
    %v1065 = vmax.f32 %v791, 0.0
    %v1066 = vmax.f32 %v796, 0.0
    %v1067 = vmax.f32 %v801, 0.0
    %v1068 = vmax.f32 %v806, 0.0
    %v1069 = vmax.f32 %v811, 0.0
    %v1070 = vmax.f32 %v816, 0.0
    %v1071 = vmax.f32 %v821, 0.0
    %v1072 = vmax.f32 %v826, 0.0
    %v1073 = vmax.f32 %v831, 0.0
    %v1074 = vmax.f32 %v836, 0.0
    %v1075 = vmax.f32 %v841, 0.0
    %v1076 = vmax.f32 %v846, 0.0
    %v1077 = vmax.f32 %v851, 0.0
    %v1078 = vmax.f32 %v856, 0.0
    %v1079 = vmax.f32 %v861, 0.0
    %v1080 = vmax.f32 %v866, 0.0
    %v1081 = vmax.f32 %v871, 0.0
    %v1082 = vmax.f32 %v876, 0.0
    %v1083 = vmax.f32 %v881, 0.0
    %v1084 = vmax.f32 %v886, 0.0
    %v1085 = vmax.f32 %v891, 0.0
    %v1086 = vmax.f32 %v896, 0.0
    %v1087 = vmax.f32 %v901, 0.0
    %v1088 = vmax.f32 %v906, 0.0
    %v1089 = vmax.f32 %v911, 0.0
    %v1090 = vmax.f32 %v916, 0.0
    %v1091 = vmax.f32 %v921, 0.0
    %v1092 = vmax.f32 %v926, 0.0
    %v1093 = vmax.f32 %v931, 0.0
    %v1094 = vmax.f32 %v936, 0.0
    %v1095 = vmax.f32 %v941, 0.0
    %v1096 = vmax.f32 %v946, 0.0
    %v1097 = vmax.f32 %v951, 0.0
    %v1098 = vmax.f32 %v956, 0.0
    %v1099 = vmax.f32 %v961, 0.0
    %v1100 = vmax.f32 %v966, 0.0
    %v1101 = vmax.f32 %v971, 0.0
    %v1102 = vmax.f32 %v976, 0.0
    %v1103 = vmax.f32 %v981, 0.0
    %v1104 = vmax.f32 %v986, 0.0
    %v1105 = vmax.f32 %v991, 0.0
    %v1106 = vmax.f32 %v996, 0.0
    %v1107 = vmax.f32 %v1001, 0.0
    %v1108 = vmax.f32 %v1006, 0.0
    %v1109 = vmax.f32 %v1011, 0.0
    %v1110 = vmax.f32 %v1016, 0.0
    %v1111 = vmax.f32 %v1021, 0.0
    %v1112 = vmax.f32 %v1026, 0.0
    %v1113 = vmax.f32 %v1031, 0.0
    %v1114 = vmax.f32 %v1036, 0.0
    %v1115 = vmax.f32 %v1041, 0.0
    %v1116 = vmax.f32 %v1046, 0.0
    %v1117 = vmax.f32 %v1051, 0.0
    %v1118 = vld [vmem:[%s3] sm:$0xff]
    %v1119 = vld [vmem:[%s3 + $0x8] sm:$0xff]
    %v1120 = vld [vmem:[%s3 + $0x10] sm:$0xff]
    %v1121 = vld [vmem:[%s3 + $0x18] sm:$0xff]
    %v1122 = vld [vmem:[%s3 + $0x20] sm:$0xff]
    %v1123 = vld [vmem:[%s3 + $0x28] sm:$0xff]
    %v1124 = vld [vmem:[%s3 + $0x30] sm:$0xff]
    %v1125 = vld [vmem:[%s3 + $0x38] sm:$0xff]
    %v1126 = vld [vmem:[%s3 + $0x40] sm:$0xff]
    %v1127 = vld [vmem:[%s3 + $0x48] sm:$0xff]
    %v1128 = vld [vmem:[%s3 + $0x50] sm:$0xff]
    %v1129 = vld [vmem:[%s3 + $0x58] sm:$0xff]
    %v1130 = vld [vmem:[%s3 + $0x60] sm:$0xff]
    %v1131 = vld [vmem:[%s3 + $0x68] sm:$0xff]
    %v1132 = vld [vmem:[%s3 + $0x70] sm:$0xff]
    %v1133 = vld [vmem:[%s3 + $0x78] sm:$0xff]
    %v1134 = vld [vmem:[%s3 + $0x80] sm:$0xff]
    %v1135 = vld [vmem:[%s3 + $0x88] sm:$0xff]
    %v1136 = vld [vmem:[%s3 + $0x90] sm:$0xff]
    %v1137 = vld [vmem:[%s3 + $0x98] sm:$0xff]
    %v1138 = vld [vmem:[%s3 + $0xa0] sm:$0xff]
    %v1139 = vld [vmem:[%s3 + $0xa8] sm:$0xff]
    %v1140 = vld [vmem:[%s3 + $0xb0] sm:$0xff]
    %v1141 = vld [vmem:[%s3 + $0xb8] sm:$0xff]
    %v1142 = vld [vmem:[%s3 + $0xc0] sm:$0xff]
    %v1143 = vld [vmem:[%s3 + $0xc8] sm:$0xff]
    %v1144 = vld [vmem:[%s3 + $0xd0] sm:$0xff]
    %v1145 = vld [vmem:[%s3 + $0xd8] sm:$0xff]
    %v1146 = vld [vmem:[%s3 + $0xe0] sm:$0xff]
    %v1147 = vld [vmem:[%s3 + $0xe8] sm:$0xff]
    %v1148 = vld [vmem:[%s3 + $0xf0] sm:$0xff]
    %v1149 = vld [vmem:[%s3 + $0xf8] sm:$0xff]
    %v1150 = vld [vmem:[%s3 + $0x100] sm:$0xff]
    %v1151 = vld [vmem:[%s3 + $0x108] sm:$0xff]
    %v1152 = vld [vmem:[%s3 + $0x110] sm:$0xff]
    %v1153 = vld [vmem:[%s3 + $0x118] sm:$0xff]
    %v1154 = vld [vmem:[%s3 + $0x120] sm:$0xff]
    %v1155 = vld [vmem:[%s3 + $0x128] sm:$0xff]
    %v1156 = vld [vmem:[%s3 + $0x130] sm:$0xff]
    %v1157 = vld [vmem:[%s3 + $0x138] sm:$0xff]
    %v1158 = vld [vmem:[%s3 + $0x140] sm:$0xff]
    %v1159 = vld [vmem:[%s3 + $0x148] sm:$0xff]
    %v1160 = vld [vmem:[%s3 + $0x150] sm:$0xff]
    %v1161 = vld [vmem:[%s3 + $0x158] sm:$0xff]
    %v1162 = vld [vmem:[%s3 + $0x160] sm:$0xff]
    %v1163 = vld [vmem:[%s3 + $0x168] sm:$0xff]
    %v1164 = vld [vmem:[%s3 + $0x170] sm:$0xff]
    %v1165 = vld [vmem:[%s3 + $0x178] sm:$0xff]
    %v1166 = vld [vmem:[%s3 + $0x180] sm:$0xff]
    %v1167 = vld [vmem:[%s3 + $0x188] sm:$0xff]
    %v1168 = vld [vmem:[%s3 + $0x190] sm:$0xff]
    %v1169 = vld [vmem:[%s3 + $0x198] sm:$0xff]
    %v1170 = vld [vmem:[%s3 + $0x1a0] sm:$0xff]
    %v1171 = vld [vmem:[%s3 + $0x1a8] sm:$0xff]
    %v1172 = vld [vmem:[%s3 + $0x1b0] sm:$0xff]
    %v1173 = vld [vmem:[%s3 + $0x1b8] sm:$0xff]
    %v1174 = vld [vmem:[%s3 + $0x1c0] sm:$0xff]
    %v1175 = vld [vmem:[%s3 + $0x1c8] sm:$0xff]
    %v1176 = vld [vmem:[%s3 + $0x1d0] sm:$0xff]
    %v1177 = vld [vmem:[%s3 + $0x1d8] sm:$0xff]
    %v1178 = vld [vmem:[%s3 + $0x1e0] sm:$0xff]
    %v1179 = vld [vmem:[%s3 + $0x1e8] sm:$0xff]
    %v1180 = vld [vmem:[%s3 + $0x1f0] sm:$0xff]
    %v1181 = vld [vmem:[%s3 + $0x1f8] sm:$0xff]
    %1183 = vset.pattern.permute.xlu0 0
    %1184 = vperm.xlu0 %1183, %v1118
    %v1185 = vpop.permute.xlu0 %1184
    %1188 = vset.pattern.permute.xlu0 0
    %1189 = vperm.xlu0 %1188, %v1119
    %v1190 = vpop.permute.xlu0 %1189
    %1193 = vset.pattern.permute.xlu0 0
    %1194 = vperm.xlu0 %1193, %v1120
    %v1195 = vpop.permute.xlu0 %1194
    %1198 = vset.pattern.permute.xlu0 0
    %1199 = vperm.xlu0 %1198, %v1121
    %v1200 = vpop.permute.xlu0 %1199
    %1203 = vset.pattern.permute.xlu0 0
    %1204 = vperm.xlu0 %1203, %v1122
    %v1205 = vpop.permute.xlu0 %1204
    %1208 = vset.pattern.permute.xlu0 0
    %1209 = vperm.xlu0 %1208, %v1123
    %v1210 = vpop.permute.xlu0 %1209
    %1213 = vset.pattern.permute.xlu0 0
    %1214 = vperm.xlu0 %1213, %v1124
    %v1215 = vpop.permute.xlu0 %1214
    %1218 = vset.pattern.permute.xlu0 0
    %1219 = vperm.xlu0 %1218, %v1125
    %v1220 = vpop.permute.xlu0 %1219
    %1223 = vset.pattern.permute.xlu0 0
    %1224 = vperm.xlu0 %1223, %v1126
    %v1225 = vpop.permute.xlu0 %1224
    %1228 = vset.pattern.permute.xlu0 0
    %1229 = vperm.xlu0 %1228, %v1127
    %v1230 = vpop.permute.xlu0 %1229
    %1233 = vset.pattern.permute.xlu0 0
    %1234 = vperm.xlu0 %1233, %v1128
    %v1235 = vpop.permute.xlu0 %1234
    %1238 = vset.pattern.permute.xlu0 0
    %1239 = vperm.xlu0 %1238, %v1129
    %v1240 = vpop.permute.xlu0 %1239
    %1243 = vset.pattern.permute.xlu0 0
    %1244 = vperm.xlu0 %1243, %v1130
    %v1245 = vpop.permute.xlu0 %1244
    %1248 = vset.pattern.permute.xlu0 0
    %1249 = vperm.xlu0 %1248, %v1131
    %v1250 = vpop.permute.xlu0 %1249
    %1253 = vset.pattern.permute.xlu0 0
    %1254 = vperm.xlu0 %1253, %v1132
    %v1255 = vpop.permute.xlu0 %1254
    %1258 = vset.pattern.permute.xlu0 0
    %1259 = vperm.xlu0 %1258, %v1133
    %v1260 = vpop.permute.xlu0 %1259
    %1263 = vset.pattern.permute.xlu0 0
    %1264 = vperm.xlu0 %1263, %v1134
    %v1265 = vpop.permute.xlu0 %1264
    %1268 = vset.pattern.permute.xlu0 0
    %1269 = vperm.xlu0 %1268, %v1135
    %v1270 = vpop.permute.xlu0 %1269
    %1273 = vset.pattern.permute.xlu0 0
    %1274 = vperm.xlu0 %1273, %v1136
    %v1275 = vpop.permute.xlu0 %1274
    %1278 = vset.pattern.permute.xlu0 0
    %1279 = vperm.xlu0 %1278, %v1137
    %v1280 = vpop.permute.xlu0 %1279
    %1283 = vset.pattern.permute.xlu0 0
    %1284 = vperm.xlu0 %1283, %v1138
    %v1285 = vpop.permute.xlu0 %1284
    %1288 = vset.pattern.permute.xlu0 0
    %1289 = vperm.xlu0 %1288, %v1139
    %v1290 = vpop.permute.xlu0 %1289
    %1293 = vset.pattern.permute.xlu0 0
    %1294 = vperm.xlu0 %1293, %v1140
    %v1295 = vpop.permute.xlu0 %1294
    %1298 = vset.pattern.permute.xlu0 0
    %1299 = vperm.xlu0 %1298, %v1141
    %v1300 = vpop.permute.xlu0 %1299
    %1303 = vset.pattern.permute.xlu0 0
    %1304 = vperm.xlu0 %1303, %v1142
    %v1305 = vpop.permute.xlu0 %1304
    %1308 = vset.pattern.permute.xlu0 0
    %1309 = vperm.xlu0 %1308, %v1143
    %v1310 = vpop.permute.xlu0 %1309
    %1313 = vset.pattern.permute.xlu0 0
    %1314 = vperm.xlu0 %1313, %v1144
    %v1315 = vpop.permute.xlu0 %1314
    %1318 = vset.pattern.permute.xlu0 0
    %1319 = vperm.xlu0 %1318, %v1145
    %v1320 = vpop.permute.xlu0 %1319
    %1323 = vset.pattern.permute.xlu0 0
    %1324 = vperm.xlu0 %1323, %v1146
    %v1325 = vpop.permute.xlu0 %1324
    %1328 = vset.pattern.permute.xlu0 0
    %1329 = vperm.xlu0 %1328, %v1147
    %v1330 = vpop.permute.xlu0 %1329
    %1333 = vset.pattern.permute.xlu0 0
    %1334 = vperm.xlu0 %1333, %v1148
    %v1335 = vpop.permute.xlu0 %1334
    %1338 = vset.pattern.permute.xlu0 0
    %1339 = vperm.xlu0 %1338, %v1149
    %v1340 = vpop.permute.xlu0 %1339
    %1343 = vset.pattern.permute.xlu0 0
    %1344 = vperm.xlu0 %1343, %v1150
    %v1345 = vpop.permute.xlu0 %1344
    %1348 = vset.pattern.permute.xlu0 0
    %1349 = vperm.xlu0 %1348, %v1151
    %v1350 = vpop.permute.xlu0 %1349
    %1353 = vset.pattern.permute.xlu0 0
    %1354 = vperm.xlu0 %1353, %v1152
    %v1355 = vpop.permute.xlu0 %1354
    %1358 = vset.pattern.permute.xlu0 0
    %1359 = vperm.xlu0 %1358, %v1153
    %v1360 = vpop.permute.xlu0 %1359
    %1363 = vset.pattern.permute.xlu0 0
    %1364 = vperm.xlu0 %1363, %v1154
    %v1365 = vpop.permute.xlu0 %1364
    %1368 = vset.pattern.permute.xlu0 0
    %1369 = vperm.xlu0 %1368, %v1155
    %v1370 = vpop.permute.xlu0 %1369
    %1373 = vset.pattern.permute.xlu0 0
    %1374 = vperm.xlu0 %1373, %v1156
    %v1375 = vpop.permute.xlu0 %1374
    %1378 = vset.pattern.permute.xlu0 0
    %1379 = vperm.xlu0 %1378, %v1157
    %v1380 = vpop.permute.xlu0 %1379
    %1383 = vset.pattern.permute.xlu0 0
    %1384 = vperm.xlu0 %1383, %v1158
    %v1385 = vpop.permute.xlu0 %1384
    %1388 = vset.pattern.permute.xlu0 0
    %1389 = vperm.xlu0 %1388, %v1159
    %v1390 = vpop.permute.xlu0 %1389
    %1393 = vset.pattern.permute.xlu0 0
    %1394 = vperm.xlu0 %1393, %v1160
    %v1395 = vpop.permute.xlu0 %1394
    %1398 = vset.pattern.permute.xlu0 0
    %1399 = vperm.xlu0 %1398, %v1161
    %v1400 = vpop.permute.xlu0 %1399
    %1403 = vset.pattern.permute.xlu0 0
    %1404 = vperm.xlu0 %1403, %v1162
    %v1405 = vpop.permute.xlu0 %1404
    %1408 = vset.pattern.permute.xlu0 0
    %1409 = vperm.xlu0 %1408, %v1163
    %v1410 = vpop.permute.xlu0 %1409
    %1413 = vset.pattern.permute.xlu0 0
    %1414 = vperm.xlu0 %1413, %v1164
    %v1415 = vpop.permute.xlu0 %1414
    %1418 = vset.pattern.permute.xlu0 0
    %1419 = vperm.xlu0 %1418, %v1165
    %v1420 = vpop.permute.xlu0 %1419
    %1423 = vset.pattern.permute.xlu0 0
    %1424 = vperm.xlu0 %1423, %v1166
    %v1425 = vpop.permute.xlu0 %1424
    %1428 = vset.pattern.permute.xlu0 0
    %1429 = vperm.xlu0 %1428, %v1167
    %v1430 = vpop.permute.xlu0 %1429
    %1433 = vset.pattern.permute.xlu0 0
    %1434 = vperm.xlu0 %1433, %v1168
    %v1435 = vpop.permute.xlu0 %1434
    %1438 = vset.pattern.permute.xlu0 0
    %1439 = vperm.xlu0 %1438, %v1169
    %v1440 = vpop.permute.xlu0 %1439
    %1443 = vset.pattern.permute.xlu0 0
    %1444 = vperm.xlu0 %1443, %v1170
    %v1445 = vpop.permute.xlu0 %1444
    %1448 = vset.pattern.permute.xlu0 0
    %1449 = vperm.xlu0 %1448, %v1171
    %v1450 = vpop.permute.xlu0 %1449
    %1453 = vset.pattern.permute.xlu0 0
    %1454 = vperm.xlu0 %1453, %v1172
    %v1455 = vpop.permute.xlu0 %1454
    %1458 = vset.pattern.permute.xlu0 0
    %1459 = vperm.xlu0 %1458, %v1173
    %v1460 = vpop.permute.xlu0 %1459
    %1463 = vset.pattern.permute.xlu0 0
    %1464 = vperm.xlu0 %1463, %v1174
    %v1465 = vpop.permute.xlu0 %1464
    %1468 = vset.pattern.permute.xlu0 0
    %1469 = vperm.xlu0 %1468, %v1175
    %v1470 = vpop.permute.xlu0 %1469
    %1473 = vset.pattern.permute.xlu0 0
    %1474 = vperm.xlu0 %1473, %v1176
    %v1475 = vpop.permute.xlu0 %1474
    %1478 = vset.pattern.permute.xlu0 0
    %1479 = vperm.xlu0 %1478, %v1177
    %v1480 = vpop.permute.xlu0 %1479
    %1483 = vset.pattern.permute.xlu0 0
    %1484 = vperm.xlu0 %1483, %v1178
    %v1485 = vpop.permute.xlu0 %1484
    %1488 = vset.pattern.permute.xlu0 0
    %1489 = vperm.xlu0 %1488, %v1179
    %v1490 = vpop.permute.xlu0 %1489
    %1493 = vset.pattern.permute.xlu0 0
    %1494 = vperm.xlu0 %1493, %v1180
    %v1495 = vpop.permute.xlu0 %1494
    %1498 = vset.pattern.permute.xlu0 0
    %1499 = vperm.xlu0 %1498, %v1181
    %v1500 = vpop.permute.xlu0 %1499
    %v1502 = vmul.f32 %v1054, %v1185
    %v1503 = vmul.f32 %v1055, %v1190
    %v1504 = vmul.f32 %v1056, %v1195
    %v1505 = vmul.f32 %v1057, %v1200
    %v1506 = vmul.f32 %v1058, %v1205
    %v1507 = vmul.f32 %v1059, %v1210
    %v1508 = vmul.f32 %v1060, %v1215
    %v1509 = vmul.f32 %v1061, %v1220
    %v1510 = vmul.f32 %v1062, %v1225
    %v1511 = vmul.f32 %v1063, %v1230
    %v1512 = vmul.f32 %v1064, %v1235
    %v1513 = vmul.f32 %v1065, %v1240
    %v1514 = vmul.f32 %v1066, %v1245
    %v1515 = vmul.f32 %v1067, %v1250
    %v1516 = vmul.f32 %v1068, %v1255
    %v1517 = vmul.f32 %v1069, %v1260
    %v1518 = vmul.f32 %v1070, %v1265
    %v1519 = vmul.f32 %v1071, %v1270
    %v1520 = vmul.f32 %v1072, %v1275
    %v1521 = vmul.f32 %v1073, %v1280
    %v1522 = vmul.f32 %v1074, %v1285
    %v1523 = vmul.f32 %v1075, %v1290
    %v1524 = vmul.f32 %v1076, %v1295
    %v1525 = vmul.f32 %v1077, %v1300
    %v1526 = vmul.f32 %v1078, %v1305
    %v1527 = vmul.f32 %v1079, %v1310
    %v1528 = vmul.f32 %v1080, %v1315
    %v1529 = vmul.f32 %v1081, %v1320
    %v1530 = vmul.f32 %v1082, %v1325
    %v1531 = vmul.f32 %v1083, %v1330
    %v1532 = vmul.f32 %v1084, %v1335
    %v1533 = vmul.f32 %v1085, %v1340
    %v1534 = vmul.f32 %v1086, %v1345
    %v1535 = vmul.f32 %v1087, %v1350
    %v1536 = vmul.f32 %v1088, %v1355
    %v1537 = vmul.f32 %v1089, %v1360
    %v1538 = vmul.f32 %v1090, %v1365
    %v1539 = vmul.f32 %v1091, %v1370
    %v1540 = vmul.f32 %v1092, %v1375
    %v1541 = vmul.f32 %v1093, %v1380
    %v1542 = vmul.f32 %v1094, %v1385
    %v1543 = vmul.f32 %v1095, %v1390
    %v1544 = vmul.f32 %v1096, %v1395
    %v1545 = vmul.f32 %v1097, %v1400
    %v1546 = vmul.f32 %v1098, %v1405
    %v1547 = vmul.f32 %v1099, %v1410
    %v1548 = vmul.f32 %v1100, %v1415
    %v1549 = vmul.f32 %v1101, %v1420
    %v1550 = vmul.f32 %v1102, %v1425
    %v1551 = vmul.f32 %v1103, %v1430
    %v1552 = vmul.f32 %v1104, %v1435
    %v1553 = vmul.f32 %v1105, %v1440
    %v1554 = vmul.f32 %v1106, %v1445
    %v1555 = vmul.f32 %v1107, %v1450
    %v1556 = vmul.f32 %v1108, %v1455
    %v1557 = vmul.f32 %v1109, %v1460
    %v1558 = vmul.f32 %v1110, %v1465
    %v1559 = vmul.f32 %v1111, %v1470
    %v1560 = vmul.f32 %v1112, %v1475
    %v1561 = vmul.f32 %v1113, %v1480
    %v1562 = vmul.f32 %v1114, %v1485
    %v1563 = vmul.f32 %v1115, %v1490
    %v1564 = vmul.f32 %v1116, %v1495
    %v1565 = vmul.f32 %v1117, %v1500
    %v1566 = vadd.f32 %v1502, %v1503
    %v1567 = vadd.f32 %v1566, %v1504
    %v1568 = vadd.f32 %v1567, %v1505
    %v1569 = vadd.f32 %v1568, %v1506
    %v1570 = vadd.f32 %v1569, %v1507
    %v1571 = vadd.f32 %v1570, %v1508
    %v1572 = vadd.f32 %v1571, %v1509
    %v1573 = vadd.f32 %v1572, %v1510
    %v1574 = vadd.f32 %v1573, %v1511
    %v1575 = vadd.f32 %v1574, %v1512
    %v1576 = vadd.f32 %v1575, %v1513
    %v1577 = vadd.f32 %v1576, %v1514
    %v1578 = vadd.f32 %v1577, %v1515
    %v1579 = vadd.f32 %v1578, %v1516
    %v1580 = vadd.f32 %v1579, %v1517
    %v1581 = vadd.f32 %v1580, %v1518
    %v1582 = vadd.f32 %v1581, %v1519
    %v1583 = vadd.f32 %v1582, %v1520
    %v1584 = vadd.f32 %v1583, %v1521
    %v1585 = vadd.f32 %v1584, %v1522
    %v1586 = vadd.f32 %v1585, %v1523
    %v1587 = vadd.f32 %v1586, %v1524
    %v1588 = vadd.f32 %v1587, %v1525
    %v1589 = vadd.f32 %v1588, %v1526
    %v1590 = vadd.f32 %v1589, %v1527
    %v1591 = vadd.f32 %v1590, %v1528
    %v1592 = vadd.f32 %v1591, %v1529
    %v1593 = vadd.f32 %v1592, %v1530
    %v1594 = vadd.f32 %v1593, %v1531
    %v1595 = vadd.f32 %v1594, %v1532
    %v1596 = vadd.f32 %v1595, %v1533
    %v1597 = vadd.f32 %v1596, %v1534
    %v1598 = vadd.f32 %v1597, %v1535
    %v1599 = vadd.f32 %v1598, %v1536
    %v1600 = vadd.f32 %v1599, %v1537
    %v1601 = vadd.f32 %v1600, %v1538
    %v1602 = vadd.f32 %v1601, %v1539
    %v1603 = vadd.f32 %v1602, %v1540
    %v1604 = vadd.f32 %v1603, %v1541
    %v1605 = vadd.f32 %v1604, %v1542
    %v1606 = vadd.f32 %v1605, %v1543
    %v1607 = vadd.f32 %v1606, %v1544
    %v1608 = vadd.f32 %v1607, %v1545
    %v1609 = vadd.f32 %v1608, %v1546
    %v1610 = vadd.f32 %v1609, %v1547
    %v1611 = vadd.f32 %v1610, %v1548
    %v1612 = vadd.f32 %v1611, %v1549
    %v1613 = vadd.f32 %v1612, %v1550
    %v1614 = vadd.f32 %v1613, %v1551
    %v1615 = vadd.f32 %v1614, %v1552
    %v1616 = vadd.f32 %v1615, %v1553
    %v1617 = vadd.f32 %v1616, %v1554
    %v1618 = vadd.f32 %v1617, %v1555
    %v1619 = vadd.f32 %v1618, %v1556
    %v1620 = vadd.f32 %v1619, %v1557
    %v1621 = vadd.f32 %v1620, %v1558
    %v1622 = vadd.f32 %v1621, %v1559
    %v1623 = vadd.f32 %v1622, %v1560
    %v1624 = vadd.f32 %v1623, %v1561
    %v1625 = vadd.f32 %v1624, %v1562
    %v1626 = vadd.f32 %v1625, %v1563
    %v1627 = vadd.f32 %v1626, %v1564
    %v1628 = vadd.f32 %v1627, %v1565
    %v1629 = vrot.slane %v1628, 4
    %v1630 = vadd.f32 %v1628, %v1629
    %v1631 = vrot.slane %v1630, 2
    %v1632 = vadd.f32 %v1630, %v1631
    %v1633 = vrot.slane %v1632, 1
    %v1634 = vadd.f32 %v1632, %v1633
    %s1635 = sld [smem:[#allocation2]]
    %v1636 = vstv %s1635
    %v1637 = vadd.f32 %v1634, %v1636
    %1638 = vst [vmem:[#allocation3] sm:$0x1] %v1637
    // Predicated region
    $region22: #{tpu_custom_call.1} parent=1 // pred_check
      _
    $region23: #{tpu_custom_call.1} parent=1 // pred_check_branch
      %1640 = sbr.rel (0) target = $region25
    $region24: #{tpu_custom_call.1} parent=1 // pred_region
      %s1642 = ssub.s32 16, 16
      %1643 = vsyncadd [#allocation4], %s1642
      %s1645 = sshll.u32 [#allocation3], 4
      %s1646 = int_to_ptr.vmem [resolvable:$true] %s1645
      %1648 = dma.vmem_to_hbm [thread:$0]  %s1646, 16, %s5, [#allocation4]
    $region25: #{tpu_custom_call.1} parent=1 // pred_fallthru
      _
    // Predicated region
    $region26: #{tpu_custom_call.1} parent=1 // pred_check
      _
    $region27: #{tpu_custom_call.1} parent=1 // pred_check_branch
      %1650 = sbr.rel (0) target = $region29
    $region28: #{tpu_custom_call.1} parent=1 // pred_region
      %1651 = dma.done [#allocation4], 16
    $region29: #{tpu_custom_call.1} parent=1 // pred_fallthru
      _
    %1652 = vsyncpa [#allocation4], 1

</llo_original>
